<compile_context>
chip_gen: v7x
topology: tpu7x:2x2x1
jax: 0.10.0
libtpu: 0.0.40
codegen_flags: <defaults>
</compile_context>

<pallas_src>
import jax
import jax.numpy as jnp
from jax.experimental import pallas as pl
from jax.experimental.pallas import tpu as pltpu


def _round_up(x, m):
    return ((x + m - 1) // m) * m


def _lora_kernel(alpha):
    """y_tile = alpha * (x_tile @ A @ B), alpha folded into the tiny (tm, rank)
    intermediate so the epilogue after the second matmul is just a cast+store."""
    # NOTE: alpha is a static hyperparameter of the module; closing over it is
    # fine (one compile per distinct alpha). If alpha varied per call it should
    # be passed as an SMEM scalar instead.
    def kernel(x_ref, a_ref, b_ref, o_ref):
        # (tm, in_dim) @ (in_dim, rank) -> (tm, rank), f32 accumulation on MXU
        xa = jnp.dot(x_ref[...], a_ref[...], preferred_element_type=jnp.float32)
        xa = xa * jnp.float32(alpha)          # scale the small intermediate
        # (tm, rank) @ (rank, out_dim_p) -> (tm, out_dim_p)
        xab = jnp.dot(xa, b_ref[...], preferred_element_type=jnp.float32)
        o_ref[...] = xab.astype(o_ref.dtype)
    return kernel


def _pick_tm(M, in_dim, out_dim_p, rank, itemsize,
             budget_bytes=20 << 20, max_tm=512):
    """Largest row-tile whose double-buffered VMEM footprint fits the budget."""
    sublane = 8 if itemsize >= 4 else 16
    weights = 2 * (in_dim * rank + rank * out_dim_p) * itemsize   # A, B (2-buf)
    per_row = 2 * (in_dim + out_dim_p) * itemsize                 # x + out (2-buf)
    avail = max(budget_bytes - weights, per_row * sublane)
    tm = int(avail // per_row)
    tm = min(tm, max_tm, _round_up(M, sublane))
    tm = max((tm // sublane) * sublane, sublane)
    return tm


def lora_forward(x, A, B, alpha, *, tm=None):
    """alpha * (x @ A @ B). x: [..., in_dim], A: [in_dim, rank], B: [rank, out_dim]."""
    orig_shape = x.shape
    in_dim, rank = A.shape
    rank_b, out_dim = B.shape
    assert rank_b == rank and orig_shape[-1] == in_dim

    # glue: flatten leading dims into one token axis
    x2d = x.reshape(-1, in_dim)
    M = x2d.shape[0]
    itemsize = jnp.dtype(x.dtype).itemsize

    # lane-dense output: pad out_dim (and B's columns) up to a multiple of 128
    out_dim_p = _round_up(out_dim, 128)
    if out_dim_p != out_dim:
        B = jnp.pad(B, ((0, 0), (0, out_dim_p - out_dim)))  # tiny (rank x pad)

    # pick token tile from the VMEM budget; enforce sublane alignment
    if tm is None:
        tm = _pick_tm(M, in_dim, out_dim_p, rank, itemsize)
    sublane = 8 if itemsize >= 4 else 16
    tm = max((tm // sublane) * sublane, sublane)

    # pad token axis so every grid step is a full tile (padded rows sliced off)
    M_pad = _round_up(M, tm)
    if M_pad != M:
        x2d = jnp.pad(x2d, ((0, M_pad - M), (0, 0)))
    grid = (M_pad // tm,)

    out2d = pl.pallas_call(
        _lora_kernel(alpha),
        out_shape=jax.ShapeDtypeStruct((M_pad, out_dim_p), x.dtype),
        grid_spec=pltpu.PrefetchScalarGridSpec(
            num_scalar_prefetch=0,
            grid=grid,
            in_specs=[
                # activation tile marches down the token axis
                pl.BlockSpec((tm, in_dim), lambda i: (i, 0)),
                # LoRA factors are small; full copies resident every step
                pl.BlockSpec((in_dim, rank), lambda i: (0, 0)),
                pl.BlockSpec((rank, out_dim_p), lambda i: (0, 0)),
            ],
            out_specs=pl.BlockSpec((tm, out_dim_p), lambda i: (i, 0)),
        ),
        compiler_params=pltpu.CompilerParams(
            dimension_semantics=("parallel",),   # megacore-shard token axis
            vmem_limit_bytes=32 << 20,           # explicit scoped-VMEM cap
        ),
    )(x2d, A.astype(x.dtype), B.astype(x.dtype))

    return out2d[:M, :out_dim].reshape(*orig_shape[:-1], out_dim)


if __name__ == "__main__":
    # Deterministic setup consistent with LoRALayer(in_dim, out_dim, rank, alpha)
    in_dim, out_dim, rank = 32, 32, 4
    alpha = 2.0

    key = jax.random.PRNGKey(0)
    kx1, kx2, ka, kb = jax.random.split(key, 4)

    # Module init: A ~ randn(in_dim, rank) / sqrt(rank), B = zeros(rank, out_dim).
    A = jax.random.normal(ka, (in_dim, rank), dtype=jnp.float32) / jnp.sqrt(
        jnp.float32(rank))
    # Deterministic nonzero B so the kernel compute is actually exercised
    # (the module's zero-init would make the output trivially zero).
    B = jax.random.normal(kb, (rank, out_dim), dtype=jnp.float32)

    # (1) multi-step grid: M = 4*512 = 2048 tokens -> tm=512 -> 4 pipelined steps
    x1 = jax.random.normal(kx1, (4, 512, in_dim), dtype=jnp.float32)
    out1 = jax.block_until_ready(lora_forward(x1, A, B, alpha))
    ref1 = alpha * (x1 @ A @ B)
    assert out1.shape == ref1.shape == (4, 512, out_dim)
    assert jnp.allclose(out1, ref1, atol=1e-4, rtol=1e-4)

    # (2) ragged token count (M = 18, not a multiple of 8) exercises the
    #     padding path instead of crashing or collapsing to tm=M.
    x2 = jax.random.normal(kx2, (2, 9, in_dim), dtype=jnp.float32)
    out2 = jax.block_until_ready(lora_forward(x2, A, B, alpha))
    ref2 = alpha * (x2 @ A @ B)
    assert out2.shape == ref2.shape == (2, 9, out_dim)
    assert jnp.allclose(out2, ref2, atol=1e-4, rtol=1e-4)

    print("KERNEL_OK")
</pallas_src>

<mosaic_0001>
module attributes {stable_mosaic.version = 11 : i64} {
  func.func @kernel(%arg0: i32, %arg1: memref<512x32xf32, #tpu.memory_space<vmem>>, %arg2: memref<32x4xf32, #tpu.memory_space<vmem>>, %arg3: memref<4x128xf32, #tpu.memory_space<vmem>>, %arg4: memref<512x128xf32, #tpu.memory_space<vmem>>) attributes {dimension_semantics = [#tpu.dimension_semantics<parallel>], iteration_bounds = array<i64: 4>, scalar_prefetch = 0 : i64, scratch_operands = 0 : i64, tpu.core_type = #tpu.core_type<tc>, window_params = [{transform_indices = @transform_0, window_bounds = array<i64: 512, 32>}, {pipeline_mode = #tpu.pipeline_mode<synchronous>, transform_indices = @transform_1, window_bounds = array<i64: 32, 4>}, {pipeline_mode = #tpu.pipeline_mode<synchronous>, transform_indices = @transform_2, window_bounds = array<i64: 4, 128>}, {transform_indices = @transform_3, window_bounds = array<i64: 512, 128>}]} {
    %c0 = arith.constant 0 : index
    %c0_0 = arith.constant 0 : index
    %0 = vector.load %arg1[%c0, %c0_0] : memref<512x32xf32, #tpu.memory_space<vmem>>, vector<512x32xf32>
    %c0_1 = arith.constant 0 : index
    %c0_2 = arith.constant 0 : index
    %1 = vector.load %arg2[%c0_1, %c0_2] : memref<32x4xf32, #tpu.memory_space<vmem>>, vector<32x4xf32>
    %cst = arith.constant dense<0.000000e+00> : vector<512x4xf32>
    %2 = tpu.matmul %0, %1, %cst {dimension_numbers = #tpu.dot_dimension_numbers<[1], [0], [0], [1], [0, 0, 1, 1], [], []>} : vector<512x32xf32>, vector<32x4xf32>, vector<512x4xf32> -> vector<512x4xf32>
    %cst_3 = arith.constant 2.000000e+00 : f32
    %3 = vector.broadcast %cst_3 : f32 to vector<512x4xf32>
    %4 = arith.mulf %2, %3 : vector<512x4xf32>
    %c0_4 = arith.constant 0 : index
    %c0_5 = arith.constant 0 : index
    %5 = vector.load %arg3[%c0_4, %c0_5] : memref<4x128xf32, #tpu.memory_space<vmem>>, vector<4x128xf32>
    %cst_6 = arith.constant dense<0.000000e+00> : vector<512x128xf32>
    %6 = tpu.matmul %4, %5, %cst_6 {dimension_numbers = #tpu.dot_dimension_numbers<[1], [0], [0], [1], [0, 0, 1, 1], [], []>} : vector<512x4xf32>, vector<4x128xf32>, vector<512x128xf32> -> vector<512x128xf32>
    %c0_7 = arith.constant 0 : index
    %c0_8 = arith.constant 0 : index
    %7 = vector.load %arg4[%c0_7, %c0_8] : memref<512x128xf32, #tpu.memory_space<vmem>>, vector<512x128xf32>
    tpu.vector_store %arg4[%c0_7, %c0_8], %6 {strides = array<i32>} : memref<512x128xf32, #tpu.memory_space<vmem>>, vector<512x128xf32>,
    return
  }
  func.func @transform_0(%arg0: i32) -> (i32, i32) {
    %c0_i32 = arith.constant 0 : i32
    %c0_i32_0 = arith.constant 0 : i32
    return %arg0, %c0_i32 : i32, i32
  }
  func.func @transform_1(%arg0: i32) -> (i32, i32) {
    %c0_i32 = arith.constant 0 : i32
    %c0_i32_0 = arith.constant 0 : i32
    %c0_i32_1 = arith.constant 0 : i32
    return %c0_i32, %c0_i32_0 : i32, i32
  }
  func.func @transform_2(%arg0: i32) -> (i32, i32) {
    %c0_i32 = arith.constant 0 : i32
    %c0_i32_0 = arith.constant 0 : i32
    %c0_i32_1 = arith.constant 0 : i32
    return %c0_i32, %c0_i32_0 : i32, i32
  }
  func.func @transform_3(%arg0: i32) -> (i32, i32) {
    %c0_i32 = arith.constant 0 : i32
    %c0_i32_0 = arith.constant 0 : i32
    return %arg0, %c0_i32 : i32, i32
  }
}

</mosaic_0001>

<llo_original>
// kernel: tpu_custom_call.1
$region0: #{tpu_custom_call.1}
  #allocation0 [shape = 'u32[]', space=smem, size = 0x4, offset = 0x4, fixed_abs, tag = 'smem constant byte address 0x4 - core index']
  #allocation1 [shape = 'u32[144,128]{1,0:T(1,128)}', space=vmem, size = 0x12000, scoped, tag = 'internal scratch']
  %s0 = inlined_call_operand.vmem [shape: f32[2048,32], index: 0, kind: input, shape index: {}]
  %s1 = inlined_call_operand.vmem [shape: f32[32,4], index: 1, kind: input, shape index: {}]
  %s2 = inlined_call_operand.vmem [shape: f32[4,128], index: 2, kind: input, shape index: {}]
  %s3 = inlined_call_operand.hbm [shape: f32[2048,128], index: 3, kind: output, shape index: {}]
  %s4 = sld [smem:[#allocation0]]
  $region45: #{tpu_custom_call.1} parent=0
    _
  %s6 = ssub.s32 1, %s4
  %s7 = scalar_select 0, %s6, %s4
  $region1: #{tpu_custom_call.1} parent=0
    #allocation2 [shape = 'u8[524288]{0}', space=vmem, size = 0x80000, scoped, tag = 'output window, operand 0']
    #allocation3 [shape = 's32[2]{0}', space=sflag, size = 0x8, scoped, tag = 'scoped memory for tpu_custom_call.1']
    %8 = vsyncpa [#allocation3], 0
    %s9 = scalar_lea.sflag [#allocation3], 1
    %10 = vsyncpa %s9, 0
    loop: start=0, step=1, limit=6
    $region2: #{tpu_custom_call.1} parent=1 // loop_pre_header
      _
    $region3: #{tpu_custom_call.1} parent=1 // loop_header
      %s12 = sphi 0, %s16
      %p13 = scmp.ge.s32.totalorder %s12, 6
      %s22 = sphi 0, %s24
      %s25 = sphi 0, %s22
      %s26 = sphi 0, %s25
      %s42 = sphi 0, %s26
      %s46 = sphi 0, %s46
      %s48 = sphi 0, %s46
      %s49 = sphi 0, %s48
      %s63 = sphi 0, %s49
      %s67 = sphi 0, %s67
      %s69 = sphi 0, %s67
      %s70 = sphi 0, %s69
      %s84 = sphi 0, %s70
      %s90 = sphi 0, %s92
      %s93 = sphi 0, %s90
      %s94 = sphi 0, %s93
      %s110 = sphi 0, %s94
    $region4: #{tpu_custom_call.1} parent=1 // loop_header_branch
      %15 = sbr.rel (%p13) target = $region8
    $region5: #{tpu_custom_call.1} parent=1 // loop_body
      %s17 = ssub.s32 %s12, 1
      %s18 = ssub.s32 %s12, 2
      %s19 = sadd.s32 %s12, 1
      %s20 = ssub.s32 %s12, %s19
      %p21 = scmp.eq.s32.totalorder %s20, 0
      %s23 = sadd.s32 %s22, 1
      %s24 = scalar_select %p21, %s22, %s23
      %p27 = pneg %p21
      %p28 = scmp.eq.s32.totalorder %s12, 3
      %p29 = por %p27, %p28
      %p30 = scmp.ne.s32.totalorder %s22, %s25
      %p31 = scmp.eq.s32.totalorder %s12, 0
      %p32 = por %p30, %p31
      %p33 = scmp.ne.s32.totalorder %s22, %s25
      %p34 = scmp.eq.s32.totalorder %s17, 3
      %p35 = por %p33, %p34
      %p36 = scmp.ne.s32.totalorder %s25, %s26
      %p37 = scmp.eq.s32.totalorder %s17, 0
      %p38 = por %p36, %p37
      %p39 = scmp.ne.s32.totalorder %s25, %s26
      %p40 = scmp.eq.s32.totalorder %s18, 3
      %p41 = por %p39, %p40
      %p43 = scmp.ne.s32.totalorder %s26, %s42
      %p44 = scmp.eq.s32.totalorder %s18, 0
      %p45 = por %p43, %p44
      %s47 = sadd.s32 %s46, 1
      %p50 = scmp.eq.s32.totalorder %s12, 3
      %p51 = scmp.ne.s32.totalorder %s46, %s48
      %p52 = scmp.eq.s32.totalorder %s12, 0
      %p53 = por %p51, %p52
      %p54 = scmp.ne.s32.totalorder %s46, %s48
      %p55 = scmp.eq.s32.totalorder %s17, 3
      %p56 = por %p54, %p55
      %p57 = scmp.ne.s32.totalorder %s48, %s49
      %p58 = scmp.eq.s32.totalorder %s17, 0
      %p59 = por %p57, %p58
      %p60 = scmp.ne.s32.totalorder %s48, %s49
      %p61 = scmp.eq.s32.totalorder %s18, 3
      %p62 = por %p60, %p61
      %p64 = scmp.ne.s32.totalorder %s49, %s63
      %p65 = scmp.eq.s32.totalorder %s18, 0
      %p66 = por %p64, %p65
      %s68 = sadd.s32 %s67, 1
      %p71 = scmp.eq.s32.totalorder %s12, 3
      %p72 = scmp.ne.s32.totalorder %s67, %s69
      %p73 = scmp.eq.s32.totalorder %s12, 0
      %p74 = por %p72, %p73
      %p75 = scmp.ne.s32.totalorder %s67, %s69
      %p76 = scmp.eq.s32.totalorder %s17, 3
      %p77 = por %p75, %p76
      %p78 = scmp.ne.s32.totalorder %s69, %s70
      %p79 = scmp.eq.s32.totalorder %s17, 0
      %p80 = por %p78, %p79
      %p81 = scmp.ne.s32.totalorder %s69, %s70
      %p82 = scmp.eq.s32.totalorder %s18, 3
      %p83 = por %p81, %p82
      %p85 = scmp.ne.s32.totalorder %s70, %s84
      %p86 = scmp.eq.s32.totalorder %s18, 0
      %p87 = por %p85, %p86
      %s88 = ssub.s32 %s12, %s19
      %p89 = scmp.eq.s32.totalorder %s88, 0
      %s91 = sadd.s32 %s90, 1
      %s92 = scalar_select %p89, %s90, %s91
      %p95 = pneg %p89
      %p96 = scmp.eq.s32.totalorder %s12, 3
      %p97 = por %p95, %p96
      %p98 = scmp.ne.s32.totalorder %s90, %s93
      %p99 = scmp.eq.s32.totalorder %s12, 0
      %p100 = por %p98, %p99
      %p101 = scmp.ne.s32.totalorder %s90, %s93
      %p102 = scmp.eq.s32.totalorder %s17, 3
      %p103 = por %p101, %p102
      %p104 = scmp.ne.s32.totalorder %s93, %s94
      %p105 = scmp.eq.s32.totalorder %s17, 0
      %p106 = por %p104, %p105
      %p107 = scmp.ne.s32.totalorder %s93, %s94
      %p108 = scmp.eq.s32.totalorder %s18, 3
      %p109 = por %p107, %p108
      %p111 = scmp.ne.s32.totalorder %s94, %s110
      %p112 = scmp.eq.s32.totalorder %s18, 0
      %p113 = por %p111, %p112
      %p114 = scmp.le.s32.totalorder 1, %s12
      %p115 = scmp.lt.s32.totalorder %s12, 5
      %p116 = pnand %p114, %p115
      %p117 = pneg %p116
      // Predicated region
      $region9: #{tpu_custom_call.1} parent=5 // pred_check
        _
      $region10: #{tpu_custom_call.1} parent=5 // pred_check_branch
        %119 = sbr.rel (%p116) target = $region12
      $region11: #{tpu_custom_call.1} parent=5 // pred_region
        %s120 = ssub.s32 %s12, 1
        // Predicated region
        $region13: #{tpu_custom_call.1} parent=11 // pred_check
          %p121 = pneg %p59
        $region14: #{tpu_custom_call.1} parent=11 // pred_check_branch
          %123 = sbr.rel (%p121) target = $region16
        $region15: #{tpu_custom_call.1} parent=11 // pred_region
          _
        $region16: #{tpu_custom_call.1} parent=11 // pred_fallthru
          _
        // Predicated region
        $region17: #{tpu_custom_call.1} parent=11 // pred_check
          %p124 = pneg %p80
        $region18: #{tpu_custom_call.1} parent=11 // pred_check_branch
          %126 = sbr.rel (%p124) target = $region20
        $region19: #{tpu_custom_call.1} parent=11 // pred_region
          _
        $region20: #{tpu_custom_call.1} parent=11 // pred_fallthru
          _
      $region12: #{tpu_custom_call.1} parent=5 // pred_fallthru
        _
      %p127 = scmp.lt.s32.totalorder %s12, 4
      // Predicated region
      $region21: #{tpu_custom_call.1} parent=5 // pred_check
        %p128 = pneg %p127
      $region22: #{tpu_custom_call.1} parent=5 // pred_check_branch
        %130 = sbr.rel (%p128) target = $region24
      $region23: #{tpu_custom_call.1} parent=5 // pred_region
        // Predicated region
        $region25: #{tpu_custom_call.1} parent=23 // pred_check
          %p131 = pneg %p32
        $region26: #{tpu_custom_call.1} parent=23 // pred_check_branch
          %133 = sbr.rel (%p131) target = $region28
        $region27: #{tpu_custom_call.1} parent=23 // pred_region
          %s134 = smul.u32 64, %s12
          %p135 = scmp.lt.s32.totalorder %s134, 255
          %s136 = scalar_select %p135, %s134, 255
          %s137 = smul.addr %s136, 8
          %s138 = scalar_lea.vmem %s0, %s137
          %s139 = smul.u32 64, %s12
        $region28: #{tpu_custom_call.1} parent=23 // pred_fallthru
          _
      $region24: #{tpu_custom_call.1} parent=5 // pred_fallthru
        _
      %p140 = scmp.le.s32.totalorder 1, %s12
      %p141 = scmp.lt.s32.totalorder %s12, 5
      %p142 = pnand %p140, %p141
      %p143 = pneg %p142
      // Predicated region
      $region29: #{tpu_custom_call.1} parent=5 // pred_check
        _
      $region30: #{tpu_custom_call.1} parent=5 // pred_check_branch
        %145 = sbr.rel (%p142) target = $region32
      $region31: #{tpu_custom_call.1} parent=5 // pred_region
        %s146 = ssub.s32 %s12, 1
        %s147 = smul.u32 64, %s17
        %p148 = scmp.lt.s32.totalorder %s147, 255
        %s149 = scalar_select %p148, %s147, 255
        %s150 = smul.addr %s149, 8
        %s151 = scalar_lea.vmem %s0, %s150
        %p152 = pneg %p38
        %p153 = pneg %p35
        %p154 = pneg %p59
        %p155 = pneg %p56
        %p156 = pneg %p80
        %p157 = pneg %p77
        %p158 = pneg %p106
        %p159 = pneg %p103
        %s160 = sand.u32 %s93, 1
        %s161 = scalar_lea.sflag [#allocation3], %s160
        %s162 = sand.u32 %s93, 1
        %s163 = smul.addr %s162, 512
        %s164 = scalar_lea.vmem [#allocation2], %s163
        %s165 = smul.u32 64, %s17
        %p166 = scmp.lt.s32.totalorder %s165, 255
        %s167 = scalar_select %p166, %s165, 255
        %s168 = smul.addr %s167, 8
        %s169 = scalar_lea.vmem %s0, %s168
        %s170 = smul.u32 64, %s17
        %s171 = smul.u32 64, %s17
        %v172 = vld [vmem:[%s169] sm:$0xff]
        %v173 = vld [vmem:[%s169 + $0x8] sm:$0xff]
        %v174 = vld [vmem:[%s169 + $0x10] sm:$0xff]
        %v175 = vld [vmem:[%s169 + $0x18] sm:$0xff]
        %v176 = vld [vmem:[%s169 + $0x20] sm:$0xff]
        %v177 = vld [vmem:[%s169 + $0x28] sm:$0xff]
        %v178 = vld [vmem:[%s169 + $0x30] sm:$0xff]
        %v179 = vld [vmem:[%s169 + $0x38] sm:$0xff]
        %v180 = vld [vmem:[%s169 + $0x40] sm:$0xff]
        %v181 = vld [vmem:[%s169 + $0x48] sm:$0xff]
        %v182 = vld [vmem:[%s169 + $0x50] sm:$0xff]
        %v183 = vld [vmem:[%s169 + $0x58] sm:$0xff]
        %v184 = vld [vmem:[%s169 + $0x60] sm:$0xff]
        %v185 = vld [vmem:[%s169 + $0x68] sm:$0xff]
        %v186 = vld [vmem:[%s169 + $0x70] sm:$0xff]
        %v187 = vld [vmem:[%s169 + $0x78] sm:$0xff]
        %v188 = vld [vmem:[%s169 + $0x80] sm:$0xff]
        %v189 = vld [vmem:[%s169 + $0x88] sm:$0xff]
        %v190 = vld [vmem:[%s169 + $0x90] sm:$0xff]
        %v191 = vld [vmem:[%s169 + $0x98] sm:$0xff]
        %v192 = vld [vmem:[%s169 + $0xa0] sm:$0xff]
        %v193 = vld [vmem:[%s169 + $0xa8] sm:$0xff]
        %v194 = vld [vmem:[%s169 + $0xb0] sm:$0xff]
        %v195 = vld [vmem:[%s169 + $0xb8] sm:$0xff]
        %v196 = vld [vmem:[%s169 + $0xc0] sm:$0xff]
        %v197 = vld [vmem:[%s169 + $0xc8] sm:$0xff]
        %v198 = vld [vmem:[%s169 + $0xd0] sm:$0xff]
        %v199 = vld [vmem:[%s169 + $0xd8] sm:$0xff]
        %v200 = vld [vmem:[%s169 + $0xe0] sm:$0xff]
        %v201 = vld [vmem:[%s169 + $0xe8] sm:$0xff]
        %v202 = vld [vmem:[%s169 + $0xf0] sm:$0xff]
        %v203 = vld [vmem:[%s169 + $0xf8] sm:$0xff]
        %v204 = vld [vmem:[%s169 + $0x100] sm:$0xff]
        %v205 = vld [vmem:[%s169 + $0x108] sm:$0xff]
        %v206 = vld [vmem:[%s169 + $0x110] sm:$0xff]
        %v207 = vld [vmem:[%s169 + $0x118] sm:$0xff]
        %v208 = vld [vmem:[%s169 + $0x120] sm:$0xff]
        %v209 = vld [vmem:[%s169 + $0x128] sm:$0xff]
        %v210 = vld [vmem:[%s169 + $0x130] sm:$0xff]
        %v211 = vld [vmem:[%s169 + $0x138] sm:$0xff]
        %v212 = vld [vmem:[%s169 + $0x140] sm:$0xff]
        %v213 = vld [vmem:[%s169 + $0x148] sm:$0xff]
        %v214 = vld [vmem:[%s169 + $0x150] sm:$0xff]
        %v215 = vld [vmem:[%s169 + $0x158] sm:$0xff]
        %v216 = vld [vmem:[%s169 + $0x160] sm:$0xff]
        %v217 = vld [vmem:[%s169 + $0x168] sm:$0xff]
        %v218 = vld [vmem:[%s169 + $0x170] sm:$0xff]
        %v219 = vld [vmem:[%s169 + $0x178] sm:$0xff]
        %v220 = vld [vmem:[%s169 + $0x180] sm:$0xff]
        %v221 = vld [vmem:[%s169 + $0x188] sm:$0xff]
        %v222 = vld [vmem:[%s169 + $0x190] sm:$0xff]
        %v223 = vld [vmem:[%s169 + $0x198] sm:$0xff]
        %v224 = vld [vmem:[%s169 + $0x1a0] sm:$0xff]
        %v225 = vld [vmem:[%s169 + $0x1a8] sm:$0xff]
        %v226 = vld [vmem:[%s169 + $0x1b0] sm:$0xff]
        %v227 = vld [vmem:[%s169 + $0x1b8] sm:$0xff]
        %v228 = vld [vmem:[%s169 + $0x1c0] sm:$0xff]
        %v229 = vld [vmem:[%s169 + $0x1c8] sm:$0xff]
        %v230 = vld [vmem:[%s169 + $0x1d0] sm:$0xff]
        %v231 = vld [vmem:[%s169 + $0x1d8] sm:$0xff]
        %v232 = vld [vmem:[%s169 + $0x1e0] sm:$0xff]
        %v233 = vld [vmem:[%s169 + $0x1e8] sm:$0xff]
        %v234 = vld [vmem:[%s169 + $0x1f0] sm:$0xff]
        %v235 = vld [vmem:[%s169 + $0x1f8] sm:$0xff]
        %v236 = vld [vmem:[%s1] sm:$0xff]
        %v237 = vld [vmem:[%s1 + $0x8] sm:$0xff]
        %v238 = vld [vmem:[%s1 + $0x10] sm:$0xff]
        %v239 = vld [vmem:[%s1 + $0x18] sm:$0xff]
        %vm240 = vcmask 261120
        %v242 = vsel %vm240, %v172, 0
        %v245 = vsel %vm240, %v173, 0
        %v248 = vsel %vm240, %v174, 0
        %v251 = vsel %vm240, %v175, 0
        %v254 = vsel %vm240, %v176, 0
        %v257 = vsel %vm240, %v177, 0
        %v260 = vsel %vm240, %v178, 0
        %v263 = vsel %vm240, %v179, 0
        %v266 = vsel %vm240, %v180, 0
        %v269 = vsel %vm240, %v181, 0
        %v272 = vsel %vm240, %v182, 0
        %v275 = vsel %vm240, %v183, 0
        %v278 = vsel %vm240, %v184, 0
        %v281 = vsel %vm240, %v185, 0
        %v284 = vsel %vm240, %v186, 0
        %v287 = vsel %vm240, %v187, 0
        %v290 = vsel %vm240, %v188, 0
        %v293 = vsel %vm240, %v189, 0
        %v296 = vsel %vm240, %v190, 0
        %v299 = vsel %vm240, %v191, 0
        %v302 = vsel %vm240, %v192, 0
        %v305 = vsel %vm240, %v193, 0
        %v308 = vsel %vm240, %v194, 0
        %v311 = vsel %vm240, %v195, 0
        %v314 = vsel %vm240, %v196, 0
        %v317 = vsel %vm240, %v197, 0
        %v320 = vsel %vm240, %v198, 0
        %v323 = vsel %vm240, %v199, 0
        %v326 = vsel %vm240, %v200, 0
        %v329 = vsel %vm240, %v201, 0
        %v332 = vsel %vm240, %v202, 0
        %v335 = vsel %vm240, %v203, 0
        %v338 = vsel %vm240, %v204, 0
        %v341 = vsel %vm240, %v205, 0
        %v344 = vsel %vm240, %v206, 0
        %v347 = vsel %vm240, %v207, 0
        %v350 = vsel %vm240, %v208, 0
        %v353 = vsel %vm240, %v209, 0
        %v356 = vsel %vm240, %v210, 0
        %v359 = vsel %vm240, %v211, 0
        %v362 = vsel %vm240, %v212, 0
        %v365 = vsel %vm240, %v213, 0
        %v368 = vsel %vm240, %v214, 0
        %v371 = vsel %vm240, %v215, 0
        %v374 = vsel %vm240, %v216, 0
        %v377 = vsel %vm240, %v217, 0
        %v380 = vsel %vm240, %v218, 0
        %v383 = vsel %vm240, %v219, 0
        %v386 = vsel %vm240, %v220, 0
        %v389 = vsel %vm240, %v221, 0
        %v392 = vsel %vm240, %v222, 0
        %v395 = vsel %vm240, %v223, 0
        %v398 = vsel %vm240, %v224, 0
        %v401 = vsel %vm240, %v225, 0
        %v404 = vsel %vm240, %v226, 0
        %v407 = vsel %vm240, %v227, 0
        %v410 = vsel %vm240, %v228, 0
        %v413 = vsel %vm240, %v229, 0
        %v416 = vsel %vm240, %v230, 0
        %v419 = vsel %vm240, %v231, 0
        %v422 = vsel %vm240, %v232, 0
        %v425 = vsel %vm240, %v233, 0
        %v428 = vsel %vm240, %v234, 0
        %v431 = vsel %vm240, %v235, 0
        %433 = vmatprep.subr.mxu0 0.0
        %434 = vmatpush1.msra.mxu0 %v236
        %435 = vmatprep.subr.mxu0 0.0
        %436 = vmatpush1.msra.mxu0 %v237
        %437 = vmatprep.subr.mxu0 0.0
        %438 = vmatpush1.msra.mxu0 %v238
        %439 = vmatprep.subr.mxu0 0.0
        %440 = vmatpush1.msra.mxu0 %v239
        %441 = vmatprep.subr.mxu0 0.0
        %442 = vmatpush1.msra.mxu0 0.0
        %443 = vmatprep.subr.mxu0 0.0
        %444 = vmatpush1.msra.mxu0 0.0
        %445 = vmatprep.subr.mxu0 0.0
        %446 = vmatpush1.msra.mxu0 0.0
        %447 = vmatprep.subr.mxu0 0.0
        %448 = vmatpush1.msra.mxu0 0.0
        %449 = vmatprep.subr.mxu0 0.0
        %450 = vmatpush1.msra.mxu0 0.0
        %451 = vmatprep.subr.mxu0 0.0
        %452 = vmatpush1.msra.mxu0 0.0
        %453 = vmatprep.subr.mxu0 0.0
        %454 = vmatpush1.msra.mxu0 0.0
        %455 = vmatprep.subr.mxu0 0.0
        %456 = vmatpush1.msra.mxu0 0.0
        %457 = vmatprep.subr.mxu0 0.0
        %458 = vmatpush1.msra.mxu0 0.0
        %459 = vmatprep.subr.mxu0 0.0
        %460 = vmatpush1.msra.mxu0 0.0
        %461 = vmatprep.subr.mxu0 0.0
        %462 = vmatpush1.msra.mxu0 0.0
        %463 = vmatprep.subr.mxu0 0.0
        %464 = vmatpush1.msra.mxu0 0.0
        %465 = vmatprep.subr.mxu0 0.0
        %466 = vmatpush1.msra.mxu0 0.0
        %467 = vmatprep.subr.mxu0 0.0
        %468 = vmatpush1.msra.mxu0 0.0
        %469 = vmatprep.subr.mxu0 0.0
        %470 = vmatpush1.msra.mxu0 0.0
        %471 = vmatprep.subr.mxu0 0.0
        %472 = vmatpush1.msra.mxu0 0.0
        %473 = vmatprep.subr.mxu0 0.0
        %474 = vmatpush1.msra.mxu0 0.0
        %475 = vmatprep.subr.mxu0 0.0
        %476 = vmatpush1.msra.mxu0 0.0
        %477 = vmatprep.subr.mxu0 0.0
        %478 = vmatpush1.msra.mxu0 0.0
        %479 = vmatprep.subr.mxu0 0.0
        %480 = vmatpush1.msra.mxu0 0.0
        %481 = vmatprep.subr.mxu0 0.0
        %482 = vmatpush1.msra.mxu0 0.0
        %483 = vmatprep.subr.mxu0 0.0
        %484 = vmatpush1.msra.mxu0 0.0
        %485 = vmatprep.subr.mxu0 0.0
        %486 = vmatpush1.msra.mxu0 0.0
        %487 = vmatprep.subr.mxu0 0.0
        %488 = vmatpush1.msra.mxu0 0.0
        %489 = vmatprep.subr.mxu0 0.0
        %490 = vmatpush1.msra.mxu0 0.0
        %491 = vmatprep.subr.mxu0 0.0
        %492 = vmatpush1.msra.mxu0 0.0
        %493 = vmatprep.subr.mxu0 0.0
        %494 = vmatpush1.msra.mxu0 0.0
        %495 = vmatprep.subr.mxu0 0.0
        %496 = vmatpush1.msra.mxu0 0.0
        %497 = vmatprep.mubr.f32.mxu0 0.0
        %498 = vmatmul.mubr.f32.gmra.mrb[0].mxu0 %v242
        %v499 = vpop.f32.mrb[0].mxu0
        %v500 = vadd.f32 0.0, %v499
        %v501 = vpop.f32.mrb[0].mxu0
        %502 = vmatprep.mubr.f32.mxu0 0.0
        %503 = vmatmul.mubr.f32.gmra.mrb[0].mxu0 %v245
        %v504 = vpop.f32.mrb[0].mxu0
        %v505 = vadd.f32 0.0, %v504
        %v506 = vpop.f32.mrb[0].mxu0
        %507 = vmatprep.mubr.f32.mxu0 0.0
        %508 = vmatmul.mubr.f32.gmra.mrb[0].mxu0 %v248
        %v509 = vpop.f32.mrb[0].mxu0
        %v510 = vadd.f32 0.0, %v509
        %v511 = vpop.f32.mrb[0].mxu0
        %512 = vmatprep.mubr.f32.mxu0 0.0
        %513 = vmatmul.mubr.f32.gmra.mrb[0].mxu0 %v251
        %v514 = vpop.f32.mrb[0].mxu0
        %v515 = vadd.f32 0.0, %v514
        %v516 = vpop.f32.mrb[0].mxu0
        %517 = vmatprep.mubr.f32.mxu0 0.0
        %518 = vmatmul.mubr.f32.gmra.mrb[0].mxu0 %v254
        %v519 = vpop.f32.mrb[0].mxu0
        %v520 = vadd.f32 0.0, %v519
        %v521 = vpop.f32.mrb[0].mxu0
        %522 = vmatprep.mubr.f32.mxu0 0.0
        %523 = vmatmul.mubr.f32.gmra.mrb[0].mxu0 %v257
        %v524 = vpop.f32.mrb[0].mxu0
        %v525 = vadd.f32 0.0, %v524
        %v526 = vpop.f32.mrb[0].mxu0
        %527 = vmatprep.mubr.f32.mxu0 0.0
        %528 = vmatmul.mubr.f32.gmra.mrb[0].mxu0 %v260
        %v529 = vpop.f32.mrb[0].mxu0
        %v530 = vadd.f32 0.0, %v529
        %v531 = vpop.f32.mrb[0].mxu0
        %532 = vmatprep.mubr.f32.mxu0 0.0
        %533 = vmatmul.mubr.f32.gmra.mrb[0].mxu0 %v263
        %v534 = vpop.f32.mrb[0].mxu0
        %v535 = vadd.f32 0.0, %v534
        %v536 = vpop.f32.mrb[0].mxu0
        %537 = vmatprep.mubr.f32.mxu0 0.0
        %538 = vmatmul.mubr.f32.gmra.mrb[0].mxu0 %v266
        %v539 = vpop.f32.mrb[0].mxu0
        %v540 = vadd.f32 0.0, %v539
        %v541 = vpop.f32.mrb[0].mxu0
        %542 = vmatprep.mubr.f32.mxu0 0.0
        %543 = vmatmul.mubr.f32.gmra.mrb[0].mxu0 %v269
        %v544 = vpop.f32.mrb[0].mxu0
        %v545 = vadd.f32 0.0, %v544
        %v546 = vpop.f32.mrb[0].mxu0
        %547 = vmatprep.mubr.f32.mxu0 0.0
        %548 = vmatmul.mubr.f32.gmra.mrb[0].mxu0 %v272
        %v549 = vpop.f32.mrb[0].mxu0
        %v550 = vadd.f32 0.0, %v549
        %v551 = vpop.f32.mrb[0].mxu0
        %552 = vmatprep.mubr.f32.mxu0 0.0
        %553 = vmatmul.mubr.f32.gmra.mrb[0].mxu0 %v275
        %v554 = vpop.f32.mrb[0].mxu0
        %v555 = vadd.f32 0.0, %v554
        %v556 = vpop.f32.mrb[0].mxu0
        %557 = vmatprep.mubr.f32.mxu0 0.0
        %558 = vmatmul.mubr.f32.gmra.mrb[0].mxu0 %v278
        %v559 = vpop.f32.mrb[0].mxu0
        %v560 = vadd.f32 0.0, %v559
        %v561 = vpop.f32.mrb[0].mxu0
        %562 = vmatprep.mubr.f32.mxu0 0.0
        %563 = vmatmul.mubr.f32.gmra.mrb[0].mxu0 %v281
        %v564 = vpop.f32.mrb[0].mxu0
        %v565 = vadd.f32 0.0, %v564
        %v566 = vpop.f32.mrb[0].mxu0
        %567 = vmatprep.mubr.f32.mxu0 0.0
        %568 = vmatmul.mubr.f32.gmra.mrb[0].mxu0 %v284
        %v569 = vpop.f32.mrb[0].mxu0
        %v570 = vadd.f32 0.0, %v569
        %v571 = vpop.f32.mrb[0].mxu0
        %572 = vmatprep.mubr.f32.mxu0 0.0
        %573 = vmatmul.mubr.f32.gmra.mrb[0].mxu0 %v287
        %v574 = vpop.f32.mrb[0].mxu0
        %v575 = vadd.f32 0.0, %v574
        %v576 = vpop.f32.mrb[0].mxu0
        %577 = vmatprep.mubr.f32.mxu0 0.0
        %578 = vmatmul.mubr.f32.gmra.mrb[0].mxu0 %v290
        %v579 = vpop.f32.mrb[0].mxu0
        %v580 = vadd.f32 0.0, %v579
        %v581 = vpop.f32.mrb[0].mxu0
        %582 = vmatprep.mubr.f32.mxu0 0.0
        %583 = vmatmul.mubr.f32.gmra.mrb[0].mxu0 %v293
        %v584 = vpop.f32.mrb[0].mxu0
        %v585 = vadd.f32 0.0, %v584
        %v586 = vpop.f32.mrb[0].mxu0
        %587 = vmatprep.mubr.f32.mxu0 0.0
        %588 = vmatmul.mubr.f32.gmra.mrb[0].mxu0 %v296
        %v589 = vpop.f32.mrb[0].mxu0
        %v590 = vadd.f32 0.0, %v589
        %v591 = vpop.f32.mrb[0].mxu0
        %592 = vmatprep.mubr.f32.mxu0 0.0
        %593 = vmatmul.mubr.f32.gmra.mrb[0].mxu0 %v299
        %v594 = vpop.f32.mrb[0].mxu0
        %v595 = vadd.f32 0.0, %v594
        %v596 = vpop.f32.mrb[0].mxu0
        %597 = vmatprep.mubr.f32.mxu0 0.0
        %598 = vmatmul.mubr.f32.gmra.mrb[0].mxu0 %v302
        %v599 = vpop.f32.mrb[0].mxu0
        %v600 = vadd.f32 0.0, %v599
        %v601 = vpop.f32.mrb[0].mxu0
        %602 = vmatprep.mubr.f32.mxu0 0.0
        %603 = vmatmul.mubr.f32.gmra.mrb[0].mxu0 %v305
        %v604 = vpop.f32.mrb[0].mxu0
        %v605 = vadd.f32 0.0, %v604
        %v606 = vpop.f32.mrb[0].mxu0
        %607 = vmatprep.mubr.f32.mxu0 0.0
        %608 = vmatmul.mubr.f32.gmra.mrb[0].mxu0 %v308
        %v609 = vpop.f32.mrb[0].mxu0
        %v610 = vadd.f32 0.0, %v609
        %v611 = vpop.f32.mrb[0].mxu0
        %612 = vmatprep.mubr.f32.mxu0 0.0
        %613 = vmatmul.mubr.f32.gmra.mrb[0].mxu0 %v311
        %v614 = vpop.f32.mrb[0].mxu0
        %v615 = vadd.f32 0.0, %v614
        %v616 = vpop.f32.mrb[0].mxu0
        %617 = vmatprep.mubr.f32.mxu0 0.0
        %618 = vmatmul.mubr.f32.gmra.mrb[0].mxu0 %v314
        %v619 = vpop.f32.mrb[0].mxu0
        %v620 = vadd.f32 0.0, %v619
        %v621 = vpop.f32.mrb[0].mxu0
        %622 = vmatprep.mubr.f32.mxu0 0.0
        %623 = vmatmul.mubr.f32.gmra.mrb[0].mxu0 %v317
        %v624 = vpop.f32.mrb[0].mxu0
        %v625 = vadd.f32 0.0, %v624
        %v626 = vpop.f32.mrb[0].mxu0
        %627 = vmatprep.mubr.f32.mxu0 0.0
        %628 = vmatmul.mubr.f32.gmra.mrb[0].mxu0 %v320
        %v629 = vpop.f32.mrb[0].mxu0
        %v630 = vadd.f32 0.0, %v629
        %v631 = vpop.f32.mrb[0].mxu0
        %632 = vmatprep.mubr.f32.mxu0 0.0
        %633 = vmatmul.mubr.f32.gmra.mrb[0].mxu0 %v323
        %v634 = vpop.f32.mrb[0].mxu0
        %v635 = vadd.f32 0.0, %v634
        %v636 = vpop.f32.mrb[0].mxu0
        %637 = vmatprep.mubr.f32.mxu0 0.0
        %638 = vmatmul.mubr.f32.gmra.mrb[0].mxu0 %v326
        %v639 = vpop.f32.mrb[0].mxu0
        %v640 = vadd.f32 0.0, %v639
        %v641 = vpop.f32.mrb[0].mxu0
        %642 = vmatprep.mubr.f32.mxu0 0.0
        %643 = vmatmul.mubr.f32.gmra.mrb[0].mxu0 %v329
        %v644 = vpop.f32.mrb[0].mxu0
        %v645 = vadd.f32 0.0, %v644
        %v646 = vpop.f32.mrb[0].mxu0
        %647 = vmatprep.mubr.f32.mxu0 0.0
        %648 = vmatmul.mubr.f32.gmra.mrb[0].mxu0 %v332
        %v649 = vpop.f32.mrb[0].mxu0
        %v650 = vadd.f32 0.0, %v649
        %v651 = vpop.f32.mrb[0].mxu0
        %652 = vmatprep.mubr.f32.mxu0 0.0
        %653 = vmatmul.mubr.f32.gmra.mrb[0].mxu0 %v335
        %v654 = vpop.f32.mrb[0].mxu0
        %v655 = vadd.f32 0.0, %v654
        %v656 = vpop.f32.mrb[0].mxu0
        %657 = vmatprep.mubr.f32.mxu0 0.0
        %658 = vmatmul.mubr.f32.gmra.mrb[0].mxu0 %v338
        %v659 = vpop.f32.mrb[0].mxu0
        %v660 = vadd.f32 0.0, %v659
        %v661 = vpop.f32.mrb[0].mxu0
        %662 = vmatprep.mubr.f32.mxu0 0.0
        %663 = vmatmul.mubr.f32.gmra.mrb[0].mxu0 %v341
        %v664 = vpop.f32.mrb[0].mxu0
        %v665 = vadd.f32 0.0, %v664
        %v666 = vpop.f32.mrb[0].mxu0
        %667 = vmatprep.mubr.f32.mxu0 0.0
        %668 = vmatmul.mubr.f32.gmra.mrb[0].mxu0 %v344
        %v669 = vpop.f32.mrb[0].mxu0
        %v670 = vadd.f32 0.0, %v669
        %v671 = vpop.f32.mrb[0].mxu0
        %672 = vmatprep.mubr.f32.mxu0 0.0
        %673 = vmatmul.mubr.f32.gmra.mrb[0].mxu0 %v347
        %v674 = vpop.f32.mrb[0].mxu0
        %v675 = vadd.f32 0.0, %v674
        %v676 = vpop.f32.mrb[0].mxu0
        %677 = vmatprep.mubr.f32.mxu0 0.0
        %678 = vmatmul.mubr.f32.gmra.mrb[0].mxu0 %v350
        %v679 = vpop.f32.mrb[0].mxu0
        %v680 = vadd.f32 0.0, %v679
        %v681 = vpop.f32.mrb[0].mxu0
        %682 = vmatprep.mubr.f32.mxu0 0.0
        %683 = vmatmul.mubr.f32.gmra.mrb[0].mxu0 %v353
        %v684 = vpop.f32.mrb[0].mxu0
        %v685 = vadd.f32 0.0, %v684
        %v686 = vpop.f32.mrb[0].mxu0
        %687 = vmatprep.mubr.f32.mxu0 0.0
        %688 = vmatmul.mubr.f32.gmra.mrb[0].mxu0 %v356
        %v689 = vpop.f32.mrb[0].mxu0
        %v690 = vadd.f32 0.0, %v689
        %v691 = vpop.f32.mrb[0].mxu0
        %692 = vmatprep.mubr.f32.mxu0 0.0
        %693 = vmatmul.mubr.f32.gmra.mrb[0].mxu0 %v359
        %v694 = vpop.f32.mrb[0].mxu0
        %v695 = vadd.f32 0.0, %v694
        %v696 = vpop.f32.mrb[0].mxu0
        %697 = vmatprep.mubr.f32.mxu0 0.0
        %698 = vmatmul.mubr.f32.gmra.mrb[0].mxu0 %v362
        %v699 = vpop.f32.mrb[0].mxu0
        %v700 = vadd.f32 0.0, %v699
        %v701 = vpop.f32.mrb[0].mxu0
        %702 = vmatprep.mubr.f32.mxu0 0.0
        %703 = vmatmul.mubr.f32.gmra.mrb[0].mxu0 %v365
        %v704 = vpop.f32.mrb[0].mxu0
        %v705 = vadd.f32 0.0, %v704
        %v706 = vpop.f32.mrb[0].mxu0
        %707 = vmatprep.mubr.f32.mxu0 0.0
        %708 = vmatmul.mubr.f32.gmra.mrb[0].mxu0 %v368
        %v709 = vpop.f32.mrb[0].mxu0
        %v710 = vadd.f32 0.0, %v709
        %v711 = vpop.f32.mrb[0].mxu0
        %712 = vmatprep.mubr.f32.mxu0 0.0
        %713 = vmatmul.mubr.f32.gmra.mrb[0].mxu0 %v371
        %v714 = vpop.f32.mrb[0].mxu0
        %v715 = vadd.f32 0.0, %v714
        %v716 = vpop.f32.mrb[0].mxu0
        %717 = vmatprep.mubr.f32.mxu0 0.0
        %718 = vmatmul.mubr.f32.gmra.mrb[0].mxu0 %v374
        %v719 = vpop.f32.mrb[0].mxu0
        %v720 = vadd.f32 0.0, %v719
        %v721 = vpop.f32.mrb[0].mxu0
        %722 = vmatprep.mubr.f32.mxu0 0.0
        %723 = vmatmul.mubr.f32.gmra.mrb[0].mxu0 %v377
        %v724 = vpop.f32.mrb[0].mxu0
        %v725 = vadd.f32 0.0, %v724
        %v726 = vpop.f32.mrb[0].mxu0
        %727 = vmatprep.mubr.f32.mxu0 0.0
        %728 = vmatmul.mubr.f32.gmra.mrb[0].mxu0 %v380
        %v729 = vpop.f32.mrb[0].mxu0
        %v730 = vadd.f32 0.0, %v729
        %v731 = vpop.f32.mrb[0].mxu0
        %732 = vmatprep.mubr.f32.mxu0 0.0
        %733 = vmatmul.mubr.f32.gmra.mrb[0].mxu0 %v383
        %v734 = vpop.f32.mrb[0].mxu0
        %v735 = vadd.f32 0.0, %v734
        %v736 = vpop.f32.mrb[0].mxu0
        %737 = vmatprep.mubr.f32.mxu0 0.0
        %738 = vmatmul.mubr.f32.gmra.mrb[0].mxu0 %v386
        %v739 = vpop.f32.mrb[0].mxu0
        %v740 = vadd.f32 0.0, %v739
        %v741 = vpop.f32.mrb[0].mxu0
        %742 = vmatprep.mubr.f32.mxu0 0.0
        %743 = vmatmul.mubr.f32.gmra.mrb[0].mxu0 %v389
        %v744 = vpop.f32.mrb[0].mxu0
        %v745 = vadd.f32 0.0, %v744
        %v746 = vpop.f32.mrb[0].mxu0
        %747 = vmatprep.mubr.f32.mxu0 0.0
        %748 = vmatmul.mubr.f32.gmra.mrb[0].mxu0 %v392
        %v749 = vpop.f32.mrb[0].mxu0
        %v750 = vadd.f32 0.0, %v749
        %v751 = vpop.f32.mrb[0].mxu0
        %752 = vmatprep.mubr.f32.mxu0 0.0
        %753 = vmatmul.mubr.f32.gmra.mrb[0].mxu0 %v395
        %v754 = vpop.f32.mrb[0].mxu0
        %v755 = vadd.f32 0.0, %v754
        %v756 = vpop.f32.mrb[0].mxu0
        %757 = vmatprep.mubr.f32.mxu0 0.0
        %758 = vmatmul.mubr.f32.gmra.mrb[0].mxu0 %v398
        %v759 = vpop.f32.mrb[0].mxu0
        %v760 = vadd.f32 0.0, %v759
        %v761 = vpop.f32.mrb[0].mxu0
        %762 = vmatprep.mubr.f32.mxu0 0.0
        %763 = vmatmul.mubr.f32.gmra.mrb[0].mxu0 %v401
        %v764 = vpop.f32.mrb[0].mxu0
        %v765 = vadd.f32 0.0, %v764
        %v766 = vpop.f32.mrb[0].mxu0
        %767 = vmatprep.mubr.f32.mxu0 0.0
        %768 = vmatmul.mubr.f32.gmra.mrb[0].mxu0 %v404
        %v769 = vpop.f32.mrb[0].mxu0
        %v770 = vadd.f32 0.0, %v769
        %v771 = vpop.f32.mrb[0].mxu0
        %772 = vmatprep.mubr.f32.mxu0 0.0
        %773 = vmatmul.mubr.f32.gmra.mrb[0].mxu0 %v407
        %v774 = vpop.f32.mrb[0].mxu0
        %v775 = vadd.f32 0.0, %v774
        %v776 = vpop.f32.mrb[0].mxu0
        %777 = vmatprep.mubr.f32.mxu0 0.0
        %778 = vmatmul.mubr.f32.gmra.mrb[0].mxu0 %v410
        %v779 = vpop.f32.mrb[0].mxu0
        %v780 = vadd.f32 0.0, %v779
        %v781 = vpop.f32.mrb[0].mxu0
        %782 = vmatprep.mubr.f32.mxu0 0.0
        %783 = vmatmul.mubr.f32.gmra.mrb[0].mxu0 %v413
        %v784 = vpop.f32.mrb[0].mxu0
        %v785 = vadd.f32 0.0, %v784
        %v786 = vpop.f32.mrb[0].mxu0
        %787 = vmatprep.mubr.f32.mxu0 0.0
        %788 = vmatmul.mubr.f32.gmra.mrb[0].mxu0 %v416
        %v789 = vpop.f32.mrb[0].mxu0
        %v790 = vadd.f32 0.0, %v789
        %v791 = vpop.f32.mrb[0].mxu0
        %792 = vmatprep.mubr.f32.mxu0 0.0
        %793 = vmatmul.mubr.f32.gmra.mrb[0].mxu0 %v419
        %v794 = vpop.f32.mrb[0].mxu0
        %v795 = vadd.f32 0.0, %v794
        %v796 = vpop.f32.mrb[0].mxu0
        %797 = vmatprep.mubr.f32.mxu0 0.0
        %798 = vmatmul.mubr.f32.gmra.mrb[0].mxu0 %v422
        %v799 = vpop.f32.mrb[0].mxu0
        %v800 = vadd.f32 0.0, %v799
        %v801 = vpop.f32.mrb[0].mxu0
        %802 = vmatprep.mubr.f32.mxu0 0.0
        %803 = vmatmul.mubr.f32.gmra.mrb[0].mxu0 %v425
        %v804 = vpop.f32.mrb[0].mxu0
        %v805 = vadd.f32 0.0, %v804
        %v806 = vpop.f32.mrb[0].mxu0
        %807 = vmatprep.mubr.f32.mxu0 0.0
        %808 = vmatmul.mubr.f32.gmra.mrb[0].mxu0 %v428
        %v809 = vpop.f32.mrb[0].mxu0
        %v810 = vadd.f32 0.0, %v809
        %v811 = vpop.f32.mrb[0].mxu0
        %812 = vmatprep.mubr.f32.mxu0 0.0
        %813 = vmatmul.mubr.f32.gmra.mrb[0].mxu0 %v431
        %v814 = vpop.f32.mrb[0].mxu0
        %v815 = vadd.f32 0.0, %v814
        %v816 = vpop.f32.mrb[0].mxu0
        %817 = vdwg.mxu0
        %v818 = vmul.f32 %v500, 2.0
        %v819 = vmul.f32 %v505, 2.0
        %v820 = vmul.f32 %v510, 2.0
        %v821 = vmul.f32 %v515, 2.0
        %v822 = vmul.f32 %v520, 2.0
        %v823 = vmul.f32 %v525, 2.0
        %v824 = vmul.f32 %v530, 2.0
        %v825 = vmul.f32 %v535, 2.0
        %v826 = vmul.f32 %v540, 2.0
        %v827 = vmul.f32 %v545, 2.0
        %v828 = vmul.f32 %v550, 2.0
        %v829 = vmul.f32 %v555, 2.0
        %v830 = vmul.f32 %v560, 2.0
        %v831 = vmul.f32 %v565, 2.0
        %v832 = vmul.f32 %v570, 2.0
        %v833 = vmul.f32 %v575, 2.0
        %v834 = vmul.f32 %v580, 2.0
        %v835 = vmul.f32 %v585, 2.0
        %v836 = vmul.f32 %v590, 2.0
        %v837 = vmul.f32 %v595, 2.0
        %v838 = vmul.f32 %v600, 2.0
        %v839 = vmul.f32 %v605, 2.0
        %v840 = vmul.f32 %v610, 2.0
        %v841 = vmul.f32 %v615, 2.0
        %v842 = vmul.f32 %v620, 2.0
        %v843 = vmul.f32 %v625, 2.0
        %v844 = vmul.f32 %v630, 2.0
        %v845 = vmul.f32 %v635, 2.0
        %v846 = vmul.f32 %v640, 2.0
        %v847 = vmul.f32 %v645, 2.0
        %v848 = vmul.f32 %v650, 2.0
        %v849 = vmul.f32 %v655, 2.0
        %v850 = vmul.f32 %v660, 2.0
        %v851 = vmul.f32 %v665, 2.0
        %v852 = vmul.f32 %v670, 2.0
        %v853 = vmul.f32 %v675, 2.0
        %v854 = vmul.f32 %v680, 2.0
        %v855 = vmul.f32 %v685, 2.0
        %v856 = vmul.f32 %v690, 2.0
        %v857 = vmul.f32 %v695, 2.0
        %v858 = vmul.f32 %v700, 2.0
        %v859 = vmul.f32 %v705, 2.0
        %v860 = vmul.f32 %v710, 2.0
        %v861 = vmul.f32 %v715, 2.0
        %v862 = vmul.f32 %v720, 2.0
        %v863 = vmul.f32 %v725, 2.0
        %v864 = vmul.f32 %v730, 2.0
        %v865 = vmul.f32 %v735, 2.0
        %v866 = vmul.f32 %v740, 2.0
        %v867 = vmul.f32 %v745, 2.0
        %v868 = vmul.f32 %v750, 2.0
        %v869 = vmul.f32 %v755, 2.0
        %v870 = vmul.f32 %v760, 2.0
        %v871 = vmul.f32 %v765, 2.0
        %v872 = vmul.f32 %v770, 2.0
        %v873 = vmul.f32 %v775, 2.0
        %v874 = vmul.f32 %v780, 2.0
        %v875 = vmul.f32 %v785, 2.0
        %v876 = vmul.f32 %v790, 2.0
        %v877 = vmul.f32 %v795, 2.0
        %v878 = vmul.f32 %v800, 2.0
        %v879 = vmul.f32 %v805, 2.0
        %v880 = vmul.f32 %v810, 2.0
        %v881 = vmul.f32 %v815, 2.0
        %v882 = vld [vmem:[%s2] sm:$0xf]
        %vm883 = vcmask 31744
        %v885 = vsel %vm883, %v818, 0
        %v888 = vsel %vm883, %v819, 0
        %v891 = vsel %vm883, %v820, 0
        %v894 = vsel %vm883, %v821, 0
        %v897 = vsel %vm883, %v822, 0
        %v900 = vsel %vm883, %v823, 0
        %v903 = vsel %vm883, %v824, 0
        %v906 = vsel %vm883, %v825, 0
        %v909 = vsel %vm883, %v826, 0
        %v912 = vsel %vm883, %v827, 0
        %v915 = vsel %vm883, %v828, 0
        %v918 = vsel %vm883, %v829, 0
        %v921 = vsel %vm883, %v830, 0
        %v924 = vsel %vm883, %v831, 0
        %v927 = vsel %vm883, %v832, 0
        %v930 = vsel %vm883, %v833, 0
        %v933 = vsel %vm883, %v834, 0
        %v936 = vsel %vm883, %v835, 0
        %v939 = vsel %vm883, %v836, 0
        %v942 = vsel %vm883, %v837, 0
        %v945 = vsel %vm883, %v838, 0
        %v948 = vsel %vm883, %v839, 0
        %v951 = vsel %vm883, %v840, 0
        %v954 = vsel %vm883, %v841, 0
        %v957 = vsel %vm883, %v842, 0
        %v960 = vsel %vm883, %v843, 0
        %v963 = vsel %vm883, %v844, 0
        %v966 = vsel %vm883, %v845, 0
        %v969 = vsel %vm883, %v846, 0
        %v972 = vsel %vm883, %v847, 0
        %v975 = vsel %vm883, %v848, 0
        %v978 = vsel %vm883, %v849, 0
        %v981 = vsel %vm883, %v850, 0
        %v984 = vsel %vm883, %v851, 0
        %v987 = vsel %vm883, %v852, 0
        %v990 = vsel %vm883, %v853, 0
        %v993 = vsel %vm883, %v854, 0
        %v996 = vsel %vm883, %v855, 0
        %v999 = vsel %vm883, %v856, 0
        %v1002 = vsel %vm883, %v857, 0
        %v1005 = vsel %vm883, %v858, 0
        %v1008 = vsel %vm883, %v859, 0
        %v1011 = vsel %vm883, %v860, 0
        %v1014 = vsel %vm883, %v861, 0
        %v1017 = vsel %vm883, %v862, 0
        %v1020 = vsel %vm883, %v863, 0
        %v1023 = vsel %vm883, %v864, 0
        %v1026 = vsel %vm883, %v865, 0
        %v1029 = vsel %vm883, %v866, 0
        %v1032 = vsel %vm883, %v867, 0
        %v1035 = vsel %vm883, %v868, 0
        %v1038 = vsel %vm883, %v869, 0
        %v1041 = vsel %vm883, %v870, 0
        %v1044 = vsel %vm883, %v871, 0
        %v1047 = vsel %vm883, %v872, 0
        %v1050 = vsel %vm883, %v873, 0
        %v1053 = vsel %vm883, %v874, 0
        %v1056 = vsel %vm883, %v875, 0
        %v1059 = vsel %vm883, %v876, 0
        %v1062 = vsel %vm883, %v877, 0
        %v1065 = vsel %vm883, %v878, 0
        %v1068 = vsel %vm883, %v879, 0
        %v1071 = vsel %vm883, %v880, 0
        %v1074 = vsel %vm883, %v881, 0
        %vm1076 = vcmask 1043456
        %v1078 = vsel %vm1076, %v882, 0
        %1080 = vmatprep.subr.mxu0 0.0
        %1081 = vmatpush1.msra.mxu0 %v1078
        %1082 = vmatprep.subr.mxu0 0.0
        %1083 = vmatpush1.msra.mxu0 0.0
        %1084 = vmatprep.subr.mxu0 0.0
        %1085 = vmatpush1.msra.mxu0 0.0
        %1086 = vmatprep.subr.mxu0 0.0
        %1087 = vmatpush1.msra.mxu0 0.0
        %1088 = vmatprep.subr.mxu0 0.0
        %1089 = vmatpush1.msra.mxu0 0.0
        %1090 = vmatprep.subr.mxu0 0.0
        %1091 = vmatpush1.msra.mxu0 0.0
        %1092 = vmatprep.subr.mxu0 0.0
        %1093 = vmatpush1.msra.mxu0 0.0
        %1094 = vmatprep.subr.mxu0 0.0
        %1095 = vmatpush1.msra.mxu0 0.0
        %1096 = vmatprep.subr.mxu0 0.0
        %1097 = vmatpush1.msra.mxu0 0.0
        %1098 = vmatprep.subr.mxu0 0.0
        %1099 = vmatpush1.msra.mxu0 0.0
        %1100 = vmatprep.subr.mxu0 0.0
        %1101 = vmatpush1.msra.mxu0 0.0
        %1102 = vmatprep.subr.mxu0 0.0
        %1103 = vmatpush1.msra.mxu0 0.0
        %1104 = vmatprep.subr.mxu0 0.0
        %1105 = vmatpush1.msra.mxu0 0.0
        %1106 = vmatprep.subr.mxu0 0.0
        %1107 = vmatpush1.msra.mxu0 0.0
        %1108 = vmatprep.subr.mxu0 0.0
        %1109 = vmatpush1.msra.mxu0 0.0
        %1110 = vmatprep.subr.mxu0 0.0
        %1111 = vmatpush1.msra.mxu0 0.0
        %1112 = vmatprep.subr.mxu0 0.0
        %1113 = vmatpush1.msra.mxu0 0.0
        %1114 = vmatprep.subr.mxu0 0.0
        %1115 = vmatpush1.msra.mxu0 0.0
        %1116 = vmatprep.subr.mxu0 0.0
        %1117 = vmatpush1.msra.mxu0 0.0
        %1118 = vmatprep.subr.mxu0 0.0
        %1119 = vmatpush1.msra.mxu0 0.0
        %1120 = vmatprep.subr.mxu0 0.0
        %1121 = vmatpush1.msra.mxu0 0.0
        %1122 = vmatprep.subr.mxu0 0.0
        %1123 = vmatpush1.msra.mxu0 0.0
        %1124 = vmatprep.subr.mxu0 0.0
        %1125 = vmatpush1.msra.mxu0 0.0
        %1126 = vmatprep.subr.mxu0 0.0
        %1127 = vmatpush1.msra.mxu0 0.0
        %1128 = vmatprep.subr.mxu0 0.0
        %1129 = vmatpush1.msra.mxu0 0.0
        %1130 = vmatprep.subr.mxu0 0.0
        %1131 = vmatpush1.msra.mxu0 0.0
        %1132 = vmatprep.subr.mxu0 0.0
        %1133 = vmatpush1.msra.mxu0 0.0
        %1134 = vmatprep.subr.mxu0 0.0
        %1135 = vmatpush1.msra.mxu0 0.0
        %1136 = vmatprep.subr.mxu0 0.0
        %1137 = vmatpush1.msra.mxu0 0.0
        %1138 = vmatprep.subr.mxu0 0.0
        %1139 = vmatpush1.msra.mxu0 0.0
        %1140 = vmatprep.subr.mxu0 0.0
        %1141 = vmatpush1.msra.mxu0 0.0
        %1142 = vmatprep.subr.mxu0 0.0
        %1143 = vmatpush1.msra.mxu0 0.0
        %1144 = vmatprep.mubr.f32.mxu0 0.0
        %1145 = vmatmul.mubr.f32.gmra.mrb[0].mxu0 %v885
        %v1146 = vpop.f32.mrb[0].mxu0
        %v1147 = vadd.f32 0.0, %v1146
        %v1148 = vpop.f32.mrb[0].mxu0
        %1149 = vmatprep.mubr.f32.mxu0 0.0
        %1150 = vmatmul.mubr.f32.gmra.mrb[0].mxu0 %v888
        %v1151 = vpop.f32.mrb[0].mxu0
        %v1152 = vadd.f32 0.0, %v1151
        %v1153 = vpop.f32.mrb[0].mxu0
        %1154 = vmatprep.mubr.f32.mxu0 0.0
        %1155 = vmatmul.mubr.f32.gmra.mrb[0].mxu0 %v891
        %v1156 = vpop.f32.mrb[0].mxu0
        %v1157 = vadd.f32 0.0, %v1156
        %v1158 = vpop.f32.mrb[0].mxu0
        %1159 = vmatprep.mubr.f32.mxu0 0.0
        %1160 = vmatmul.mubr.f32.gmra.mrb[0].mxu0 %v894
        %v1161 = vpop.f32.mrb[0].mxu0
        %v1162 = vadd.f32 0.0, %v1161
        %v1163 = vpop.f32.mrb[0].mxu0
        %1164 = vmatprep.mubr.f32.mxu0 0.0
        %1165 = vmatmul.mubr.f32.gmra.mrb[0].mxu0 %v897
        %v1166 = vpop.f32.mrb[0].mxu0
        %v1167 = vadd.f32 0.0, %v1166
        %v1168 = vpop.f32.mrb[0].mxu0
        %1169 = vmatprep.mubr.f32.mxu0 0.0
        %1170 = vmatmul.mubr.f32.gmra.mrb[0].mxu0 %v900
        %v1171 = vpop.f32.mrb[0].mxu0
        %v1172 = vadd.f32 0.0, %v1171
        %v1173 = vpop.f32.mrb[0].mxu0
        %1174 = vmatprep.mubr.f32.mxu0 0.0
        %1175 = vmatmul.mubr.f32.gmra.mrb[0].mxu0 %v903
        %v1176 = vpop.f32.mrb[0].mxu0
        %v1177 = vadd.f32 0.0, %v1176
        %v1178 = vpop.f32.mrb[0].mxu0
        %1179 = vmatprep.mubr.f32.mxu0 0.0
        %1180 = vmatmul.mubr.f32.gmra.mrb[0].mxu0 %v906
        %v1181 = vpop.f32.mrb[0].mxu0
        %v1182 = vadd.f32 0.0, %v1181
        %v1183 = vpop.f32.mrb[0].mxu0
        %1184 = vmatprep.mubr.f32.mxu0 0.0
        %1185 = vmatmul.mubr.f32.gmra.mrb[0].mxu0 %v909
        %v1186 = vpop.f32.mrb[0].mxu0
        %v1187 = vadd.f32 0.0, %v1186
        %v1188 = vpop.f32.mrb[0].mxu0
        %1189 = vmatprep.mubr.f32.mxu0 0.0
        %1190 = vmatmul.mubr.f32.gmra.mrb[0].mxu0 %v912
        %v1191 = vpop.f32.mrb[0].mxu0
        %v1192 = vadd.f32 0.0, %v1191
        %v1193 = vpop.f32.mrb[0].mxu0
        %1194 = vmatprep.mubr.f32.mxu0 0.0
        %1195 = vmatmul.mubr.f32.gmra.mrb[0].mxu0 %v915
        %v1196 = vpop.f32.mrb[0].mxu0
        %v1197 = vadd.f32 0.0, %v1196
        %v1198 = vpop.f32.mrb[0].mxu0
        %1199 = vmatprep.mubr.f32.mxu0 0.0
        %1200 = vmatmul.mubr.f32.gmra.mrb[0].mxu0 %v918
        %v1201 = vpop.f32.mrb[0].mxu0
        %v1202 = vadd.f32 0.0, %v1201
        %v1203 = vpop.f32.mrb[0].mxu0
        %1204 = vmatprep.mubr.f32.mxu0 0.0
        %1205 = vmatmul.mubr.f32.gmra.mrb[0].mxu0 %v921
        %v1206 = vpop.f32.mrb[0].mxu0
        %v1207 = vadd.f32 0.0, %v1206
        %v1208 = vpop.f32.mrb[0].mxu0
        %1209 = vmatprep.mubr.f32.mxu0 0.0
        %1210 = vmatmul.mubr.f32.gmra.mrb[0].mxu0 %v924
        %v1211 = vpop.f32.mrb[0].mxu0
        %v1212 = vadd.f32 0.0, %v1211
        %v1213 = vpop.f32.mrb[0].mxu0
        %1214 = vmatprep.mubr.f32.mxu0 0.0
        %1215 = vmatmul.mubr.f32.gmra.mrb[0].mxu0 %v927
        %v1216 = vpop.f32.mrb[0].mxu0
        %v1217 = vadd.f32 0.0, %v1216
        %v1218 = vpop.f32.mrb[0].mxu0
        %1219 = vmatprep.mubr.f32.mxu0 0.0
        %1220 = vmatmul.mubr.f32.gmra.mrb[0].mxu0 %v930
        %v1221 = vpop.f32.mrb[0].mxu0
        %v1222 = vadd.f32 0.0, %v1221
        %v1223 = vpop.f32.mrb[0].mxu0
        %1224 = vmatprep.mubr.f32.mxu0 0.0
        %1225 = vmatmul.mubr.f32.gmra.mrb[0].mxu0 %v933
        %v1226 = vpop.f32.mrb[0].mxu0
        %v1227 = vadd.f32 0.0, %v1226
        %v1228 = vpop.f32.mrb[0].mxu0
        %1229 = vmatprep.mubr.f32.mxu0 0.0
        %1230 = vmatmul.mubr.f32.gmra.mrb[0].mxu0 %v936
        %v1231 = vpop.f32.mrb[0].mxu0
        %v1232 = vadd.f32 0.0, %v1231
        %v1233 = vpop.f32.mrb[0].mxu0
        %1234 = vmatprep.mubr.f32.mxu0 0.0
        %1235 = vmatmul.mubr.f32.gmra.mrb[0].mxu0 %v939
        %v1236 = vpop.f32.mrb[0].mxu0
        %v1237 = vadd.f32 0.0, %v1236
        %v1238 = vpop.f32.mrb[0].mxu0
        %1239 = vmatprep.mubr.f32.mxu0 0.0
        %1240 = vmatmul.mubr.f32.gmra.mrb[0].mxu0 %v942
        %v1241 = vpop.f32.mrb[0].mxu0
        %v1242 = vadd.f32 0.0, %v1241
        %v1243 = vpop.f32.mrb[0].mxu0
        %1244 = vmatprep.mubr.f32.mxu0 0.0
        %1245 = vmatmul.mubr.f32.gmra.mrb[0].mxu0 %v945
        %v1246 = vpop.f32.mrb[0].mxu0
        %v1247 = vadd.f32 0.0, %v1246
        %v1248 = vpop.f32.mrb[0].mxu0
        %1249 = vmatprep.mubr.f32.mxu0 0.0
        %1250 = vmatmul.mubr.f32.gmra.mrb[0].mxu0 %v948
        %v1251 = vpop.f32.mrb[0].mxu0
        %v1252 = vadd.f32 0.0, %v1251
        %v1253 = vpop.f32.mrb[0].mxu0
        %1254 = vmatprep.mubr.f32.mxu0 0.0
        %1255 = vmatmul.mubr.f32.gmra.mrb[0].mxu0 %v951
        %v1256 = vpop.f32.mrb[0].mxu0
        %v1257 = vadd.f32 0.0, %v1256
        %v1258 = vpop.f32.mrb[0].mxu0
        %1259 = vmatprep.mubr.f32.mxu0 0.0
        %1260 = vmatmul.mubr.f32.gmra.mrb[0].mxu0 %v954
        %v1261 = vpop.f32.mrb[0].mxu0
        %v1262 = vadd.f32 0.0, %v1261
        %v1263 = vpop.f32.mrb[0].mxu0
        %1264 = vmatprep.mubr.f32.mxu0 0.0
        %1265 = vmatmul.mubr.f32.gmra.mrb[0].mxu0 %v957
        %v1266 = vpop.f32.mrb[0].mxu0
        %v1267 = vadd.f32 0.0, %v1266
        %v1268 = vpop.f32.mrb[0].mxu0
        %1269 = vmatprep.mubr.f32.mxu0 0.0
        %1270 = vmatmul.mubr.f32.gmra.mrb[0].mxu0 %v960
        %v1271 = vpop.f32.mrb[0].mxu0
        %v1272 = vadd.f32 0.0, %v1271
        %v1273 = vpop.f32.mrb[0].mxu0
        %1274 = vmatprep.mubr.f32.mxu0 0.0
        %1275 = vmatmul.mubr.f32.gmra.mrb[0].mxu0 %v963
        %v1276 = vpop.f32.mrb[0].mxu0
        %v1277 = vadd.f32 0.0, %v1276
        %v1278 = vpop.f32.mrb[0].mxu0
        %1279 = vmatprep.mubr.f32.mxu0 0.0
        %1280 = vmatmul.mubr.f32.gmra.mrb[0].mxu0 %v966
        %v1281 = vpop.f32.mrb[0].mxu0
        %v1282 = vadd.f32 0.0, %v1281
        %v1283 = vpop.f32.mrb[0].mxu0
        %1284 = vmatprep.mubr.f32.mxu0 0.0
        %1285 = vmatmul.mubr.f32.gmra.mrb[0].mxu0 %v969
        %v1286 = vpop.f32.mrb[0].mxu0
        %v1287 = vadd.f32 0.0, %v1286
        %v1288 = vpop.f32.mrb[0].mxu0
        %1289 = vmatprep.mubr.f32.mxu0 0.0
        %1290 = vmatmul.mubr.f32.gmra.mrb[0].mxu0 %v972
        %v1291 = vpop.f32.mrb[0].mxu0
        %v1292 = vadd.f32 0.0, %v1291
        %v1293 = vpop.f32.mrb[0].mxu0
        %1294 = vmatprep.mubr.f32.mxu0 0.0
        %1295 = vmatmul.mubr.f32.gmra.mrb[0].mxu0 %v975
        %v1296 = vpop.f32.mrb[0].mxu0
        %v1297 = vadd.f32 0.0, %v1296
        %v1298 = vpop.f32.mrb[0].mxu0
        %1299 = vmatprep.mubr.f32.mxu0 0.0
        %1300 = vmatmul.mubr.f32.gmra.mrb[0].mxu0 %v978
        %v1301 = vpop.f32.mrb[0].mxu0
        %v1302 = vadd.f32 0.0, %v1301
        %v1303 = vpop.f32.mrb[0].mxu0
        %1304 = vmatprep.mubr.f32.mxu0 0.0
        %1305 = vmatmul.mubr.f32.gmra.mrb[0].mxu0 %v981
        %v1306 = vpop.f32.mrb[0].mxu0
        %v1307 = vadd.f32 0.0, %v1306
        %v1308 = vpop.f32.mrb[0].mxu0
        %1309 = vmatprep.mubr.f32.mxu0 0.0
        %1310 = vmatmul.mubr.f32.gmra.mrb[0].mxu0 %v984
        %v1311 = vpop.f32.mrb[0].mxu0
        %v1312 = vadd.f32 0.0, %v1311
        %v1313 = vpop.f32.mrb[0].mxu0
        %1314 = vmatprep.mubr.f32.mxu0 0.0
        %1315 = vmatmul.mubr.f32.gmra.mrb[0].mxu0 %v987
        %v1316 = vpop.f32.mrb[0].mxu0
        %v1317 = vadd.f32 0.0, %v1316
        %v1318 = vpop.f32.mrb[0].mxu0
        %1319 = vmatprep.mubr.f32.mxu0 0.0
        %1320 = vmatmul.mubr.f32.gmra.mrb[0].mxu0 %v990
        %v1321 = vpop.f32.mrb[0].mxu0
        %v1322 = vadd.f32 0.0, %v1321
        %v1323 = vpop.f32.mrb[0].mxu0
        %1324 = vmatprep.mubr.f32.mxu0 0.0
        %1325 = vmatmul.mubr.f32.gmra.mrb[0].mxu0 %v993
        %v1326 = vpop.f32.mrb[0].mxu0
        %v1327 = vadd.f32 0.0, %v1326
        %v1328 = vpop.f32.mrb[0].mxu0
        %1329 = vmatprep.mubr.f32.mxu0 0.0
        %1330 = vmatmul.mubr.f32.gmra.mrb[0].mxu0 %v996
        %v1331 = vpop.f32.mrb[0].mxu0
        %v1332 = vadd.f32 0.0, %v1331
        %v1333 = vpop.f32.mrb[0].mxu0
        %1334 = vmatprep.mubr.f32.mxu0 0.0
        %1335 = vmatmul.mubr.f32.gmra.mrb[0].mxu0 %v999
        %v1336 = vpop.f32.mrb[0].mxu0
        %v1337 = vadd.f32 0.0, %v1336
        %v1338 = vpop.f32.mrb[0].mxu0
        %1339 = vmatprep.mubr.f32.mxu0 0.0
        %1340 = vmatmul.mubr.f32.gmra.mrb[0].mxu0 %v1002
        %v1341 = vpop.f32.mrb[0].mxu0
        %v1342 = vadd.f32 0.0, %v1341
        %v1343 = vpop.f32.mrb[0].mxu0
        %1344 = vmatprep.mubr.f32.mxu0 0.0
        %1345 = vmatmul.mubr.f32.gmra.mrb[0].mxu0 %v1005
        %v1346 = vpop.f32.mrb[0].mxu0
        %v1347 = vadd.f32 0.0, %v1346
        %v1348 = vpop.f32.mrb[0].mxu0
        %1349 = vmatprep.mubr.f32.mxu0 0.0
        %1350 = vmatmul.mubr.f32.gmra.mrb[0].mxu0 %v1008
        %v1351 = vpop.f32.mrb[0].mxu0
        %v1352 = vadd.f32 0.0, %v1351
        %v1353 = vpop.f32.mrb[0].mxu0
        %1354 = vmatprep.mubr.f32.mxu0 0.0
        %1355 = vmatmul.mubr.f32.gmra.mrb[0].mxu0 %v1011
        %v1356 = vpop.f32.mrb[0].mxu0
        %v1357 = vadd.f32 0.0, %v1356
        %v1358 = vpop.f32.mrb[0].mxu0
        %1359 = vmatprep.mubr.f32.mxu0 0.0
        %1360 = vmatmul.mubr.f32.gmra.mrb[0].mxu0 %v1014
        %v1361 = vpop.f32.mrb[0].mxu0
        %v1362 = vadd.f32 0.0, %v1361
        %v1363 = vpop.f32.mrb[0].mxu0
        %1364 = vmatprep.mubr.f32.mxu0 0.0
        %1365 = vmatmul.mubr.f32.gmra.mrb[0].mxu0 %v1017
        %v1366 = vpop.f32.mrb[0].mxu0
        %v1367 = vadd.f32 0.0, %v1366
        %v1368 = vpop.f32.mrb[0].mxu0
        %1369 = vmatprep.mubr.f32.mxu0 0.0
        %1370 = vmatmul.mubr.f32.gmra.mrb[0].mxu0 %v1020
        %v1371 = vpop.f32.mrb[0].mxu0
        %v1372 = vadd.f32 0.0, %v1371
        %v1373 = vpop.f32.mrb[0].mxu0
        %1374 = vmatprep.mubr.f32.mxu0 0.0
        %1375 = vmatmul.mubr.f32.gmra.mrb[0].mxu0 %v1023
        %v1376 = vpop.f32.mrb[0].mxu0
        %v1377 = vadd.f32 0.0, %v1376
        %v1378 = vpop.f32.mrb[0].mxu0
        %1379 = vmatprep.mubr.f32.mxu0 0.0
        %1380 = vmatmul.mubr.f32.gmra.mrb[0].mxu0 %v1026
        %v1381 = vpop.f32.mrb[0].mxu0
        %v1382 = vadd.f32 0.0, %v1381
        %v1383 = vpop.f32.mrb[0].mxu0
        %1384 = vmatprep.mubr.f32.mxu0 0.0
        %1385 = vmatmul.mubr.f32.gmra.mrb[0].mxu0 %v1029
        %v1386 = vpop.f32.mrb[0].mxu0
        %v1387 = vadd.f32 0.0, %v1386
        %v1388 = vpop.f32.mrb[0].mxu0
        %1389 = vmatprep.mubr.f32.mxu0 0.0
        %1390 = vmatmul.mubr.f32.gmra.mrb[0].mxu0 %v1032
        %v1391 = vpop.f32.mrb[0].mxu0
        %v1392 = vadd.f32 0.0, %v1391
        %v1393 = vpop.f32.mrb[0].mxu0
        %1394 = vmatprep.mubr.f32.mxu0 0.0
        %1395 = vmatmul.mubr.f32.gmra.mrb[0].mxu0 %v1035
        %v1396 = vpop.f32.mrb[0].mxu0
        %v1397 = vadd.f32 0.0, %v1396
        %v1398 = vpop.f32.mrb[0].mxu0
        %1399 = vmatprep.mubr.f32.mxu0 0.0
        %1400 = vmatmul.mubr.f32.gmra.mrb[0].mxu0 %v1038
        %v1401 = vpop.f32.mrb[0].mxu0
        %v1402 = vadd.f32 0.0, %v1401
        %v1403 = vpop.f32.mrb[0].mxu0
        %1404 = vmatprep.mubr.f32.mxu0 0.0
        %1405 = vmatmul.mubr.f32.gmra.mrb[0].mxu0 %v1041
        %v1406 = vpop.f32.mrb[0].mxu0
        %v1407 = vadd.f32 0.0, %v1406
        %v1408 = vpop.f32.mrb[0].mxu0
        %1409 = vmatprep.mubr.f32.mxu0 0.0
        %1410 = vmatmul.mubr.f32.gmra.mrb[0].mxu0 %v1044
        %v1411 = vpop.f32.mrb[0].mxu0
        %v1412 = vadd.f32 0.0, %v1411
        %v1413 = vpop.f32.mrb[0].mxu0
        %1414 = vmatprep.mubr.f32.mxu0 0.0
        %1415 = vmatmul.mubr.f32.gmra.mrb[0].mxu0 %v1047
        %v1416 = vpop.f32.mrb[0].mxu0
        %v1417 = vadd.f32 0.0, %v1416
        %v1418 = vpop.f32.mrb[0].mxu0
        %1419 = vmatprep.mubr.f32.mxu0 0.0
        %1420 = vmatmul.mubr.f32.gmra.mrb[0].mxu0 %v1050
        %v1421 = vpop.f32.mrb[0].mxu0
        %v1422 = vadd.f32 0.0, %v1421
        %v1423 = vpop.f32.mrb[0].mxu0
        %1424 = vmatprep.mubr.f32.mxu0 0.0
        %1425 = vmatmul.mubr.f32.gmra.mrb[0].mxu0 %v1053
        %v1426 = vpop.f32.mrb[0].mxu0
        %v1427 = vadd.f32 0.0, %v1426
        %v1428 = vpop.f32.mrb[0].mxu0
        %1429 = vmatprep.mubr.f32.mxu0 0.0
        %1430 = vmatmul.mubr.f32.gmra.mrb[0].mxu0 %v1056
        %v1431 = vpop.f32.mrb[0].mxu0
        %v1432 = vadd.f32 0.0, %v1431
        %v1433 = vpop.f32.mrb[0].mxu0
        %1434 = vmatprep.mubr.f32.mxu0 0.0
        %1435 = vmatmul.mubr.f32.gmra.mrb[0].mxu0 %v1059
        %v1436 = vpop.f32.mrb[0].mxu0
        %v1437 = vadd.f32 0.0, %v1436
        %v1438 = vpop.f32.mrb[0].mxu0
        %1439 = vmatprep.mubr.f32.mxu0 0.0
        %1440 = vmatmul.mubr.f32.gmra.mrb[0].mxu0 %v1062
        %v1441 = vpop.f32.mrb[0].mxu0
        %v1442 = vadd.f32 0.0, %v1441
        %v1443 = vpop.f32.mrb[0].mxu0
        %1444 = vmatprep.mubr.f32.mxu0 0.0
        %1445 = vmatmul.mubr.f32.gmra.mrb[0].mxu0 %v1065
        %v1446 = vpop.f32.mrb[0].mxu0
        %v1447 = vadd.f32 0.0, %v1446
        %v1448 = vpop.f32.mrb[0].mxu0
        %1449 = vmatprep.mubr.f32.mxu0 0.0
        %1450 = vmatmul.mubr.f32.gmra.mrb[0].mxu0 %v1068
        %v1451 = vpop.f32.mrb[0].mxu0
        %v1452 = vadd.f32 0.0, %v1451
        %v1453 = vpop.f32.mrb[0].mxu0
        %1454 = vmatprep.mubr.f32.mxu0 0.0
        %1455 = vmatmul.mubr.f32.gmra.mrb[0].mxu0 %v1071
        %v1456 = vpop.f32.mrb[0].mxu0
        %v1457 = vadd.f32 0.0, %v1456
        %v1458 = vpop.f32.mrb[0].mxu0
        %1459 = vmatprep.mubr.f32.mxu0 0.0
        %1460 = vmatmul.mubr.f32.gmra.mrb[0].mxu0 %v1074
        %v1461 = vpop.f32.mrb[0].mxu0
        %v1462 = vadd.f32 0.0, %v1461
        %v1463 = vpop.f32.mrb[0].mxu0
        %1464 = vdwg.mxu0
        %1465 = vst [vmem:[%s164] sm:$0xff] %v1147
        %1466 = vst [vmem:[%s164 + $0x8] sm:$0xff] %v1152
        %1467 = vst [vmem:[%s164 + $0x10] sm:$0xff] %v1157
        %1468 = vst [vmem:[%s164 + $0x18] sm:$0xff] %v1162
        %1469 = vst [vmem:[%s164 + $0x20] sm:$0xff] %v1167
        %1470 = vst [vmem:[%s164 + $0x28] sm:$0xff] %v1172
        %1471 = vst [vmem:[%s164 + $0x30] sm:$0xff] %v1177
        %1472 = vst [vmem:[%s164 + $0x38] sm:$0xff] %v1182
        %1473 = vst [vmem:[%s164 + $0x40] sm:$0xff] %v1187
        %1474 = vst [vmem:[%s164 + $0x48] sm:$0xff] %v1192
        %1475 = vst [vmem:[%s164 + $0x50] sm:$0xff] %v1197
        %1476 = vst [vmem:[%s164 + $0x58] sm:$0xff] %v1202
        %1477 = vst [vmem:[%s164 + $0x60] sm:$0xff] %v1207
        %1478 = vst [vmem:[%s164 + $0x68] sm:$0xff] %v1212
        %1479 = vst [vmem:[%s164 + $0x70] sm:$0xff] %v1217
        %1480 = vst [vmem:[%s164 + $0x78] sm:$0xff] %v1222
        %1481 = vst [vmem:[%s164 + $0x80] sm:$0xff] %v1227
        %1482 = vst [vmem:[%s164 + $0x88] sm:$0xff] %v1232
        %1483 = vst [vmem:[%s164 + $0x90] sm:$0xff] %v1237
        %1484 = vst [vmem:[%s164 + $0x98] sm:$0xff] %v1242
        %1485 = vst [vmem:[%s164 + $0xa0] sm:$0xff] %v1247
        %1486 = vst [vmem:[%s164 + $0xa8] sm:$0xff] %v1252
        %1487 = vst [vmem:[%s164 + $0xb0] sm:$0xff] %v1257
        %1488 = vst [vmem:[%s164 + $0xb8] sm:$0xff] %v1262
        %1489 = vst [vmem:[%s164 + $0xc0] sm:$0xff] %v1267
        %1490 = vst [vmem:[%s164 + $0xc8] sm:$0xff] %v1272
        %1491 = vst [vmem:[%s164 + $0xd0] sm:$0xff] %v1277
        %1492 = vst [vmem:[%s164 + $0xd8] sm:$0xff] %v1282
        %1493 = vst [vmem:[%s164 + $0xe0] sm:$0xff] %v1287
        %1494 = vst [vmem:[%s164 + $0xe8] sm:$0xff] %v1292
        %1495 = vst [vmem:[%s164 + $0xf0] sm:$0xff] %v1297
        %1496 = vst [vmem:[%s164 + $0xf8] sm:$0xff] %v1302
        %1497 = vst [vmem:[%s164 + $0x100] sm:$0xff] %v1307
        %1498 = vst [vmem:[%s164 + $0x108] sm:$0xff] %v1312
        %1499 = vst [vmem:[%s164 + $0x110] sm:$0xff] %v1317
        %1500 = vst [vmem:[%s164 + $0x118] sm:$0xff] %v1322
        %1501 = vst [vmem:[%s164 + $0x120] sm:$0xff] %v1327
        %1502 = vst [vmem:[%s164 + $0x128] sm:$0xff] %v1332
        %1503 = vst [vmem:[%s164 + $0x130] sm:$0xff] %v1337
        %1504 = vst [vmem:[%s164 + $0x138] sm:$0xff] %v1342
        %1505 = vst [vmem:[%s164 + $0x140] sm:$0xff] %v1347
        %1506 = vst [vmem:[%s164 + $0x148] sm:$0xff] %v1352
        %1507 = vst [vmem:[%s164 + $0x150] sm:$0xff] %v1357
        %1508 = vst [vmem:[%s164 + $0x158] sm:$0xff] %v1362
        %1509 = vst [vmem:[%s164 + $0x160] sm:$0xff] %v1367
        %1510 = vst [vmem:[%s164 + $0x168] sm:$0xff] %v1372
        %1511 = vst [vmem:[%s164 + $0x170] sm:$0xff] %v1377
        %1512 = vst [vmem:[%s164 + $0x178] sm:$0xff] %v1382
        %1513 = vst [vmem:[%s164 + $0x180] sm:$0xff] %v1387
        %1514 = vst [vmem:[%s164 + $0x188] sm:$0xff] %v1392
        %1515 = vst [vmem:[%s164 + $0x190] sm:$0xff] %v1397
        %1516 = vst [vmem:[%s164 + $0x198] sm:$0xff] %v1402
        %1517 = vst [vmem:[%s164 + $0x1a0] sm:$0xff] %v1407
        %1518 = vst [vmem:[%s164 + $0x1a8] sm:$0xff] %v1412
        %1519 = vst [vmem:[%s164 + $0x1b0] sm:$0xff] %v1417
        %1520 = vst [vmem:[%s164 + $0x1b8] sm:$0xff] %v1422
        %1521 = vst [vmem:[%s164 + $0x1c0] sm:$0xff] %v1427
        %1522 = vst [vmem:[%s164 + $0x1c8] sm:$0xff] %v1432
        %1523 = vst [vmem:[%s164 + $0x1d0] sm:$0xff] %v1437
        %1524 = vst [vmem:[%s164 + $0x1d8] sm:$0xff] %v1442
        %1525 = vst [vmem:[%s164 + $0x1e0] sm:$0xff] %v1447
        %1526 = vst [vmem:[%s164 + $0x1e8] sm:$0xff] %v1452
        %1527 = vst [vmem:[%s164 + $0x1f0] sm:$0xff] %v1457
        %1528 = vst [vmem:[%s164 + $0x1f8] sm:$0xff] %v1462
        %s1529 = sand.u32 %s93, 1
        %s1530 = scalar_lea.sflag [#allocation3], %s1529
        %s1531 = sand.u32 %s93, 1
        %s1532 = smul.addr %s1531, 512
        %s1533 = scalar_lea.vmem [#allocation2], %s1532
        // Predicated region
        $region33: #{tpu_custom_call.1} parent=31 // pred_check
          %p1534 = pneg %p103
        $region34: #{tpu_custom_call.1} parent=31 // pred_check_branch
          %1536 = sbr.rel (%p1534) target = $region36
        $region35: #{tpu_custom_call.1} parent=31 // pred_region
          %s1537 = smul.u32 64, %s17
          %s1539 = ssub.s32 8192, 8192
          %1540 = vsyncadd %s1530, %s1539
          %s1541 = smul.addr %s1537, 128
          %s1542 = scalar_lea.hbm %s3, %s1541
          %s1543 = sshll.u32 %s1533, 4
          %s1544 = int_to_ptr.vmem [resolvable:$true] %s1543
          %1549 = dma.vmem_to_hbm [thread:$0]  %s1544, 8192, %s1542, %s1530, 128, 128, 8
        $region36: #{tpu_custom_call.1} parent=31 // pred_fallthru
          _
      $region32: #{tpu_custom_call.1} parent=5 // pred_fallthru
        _
      %p1550 = scmp.le.s32.totalorder 2, %s12
      // Predicated region
      $region37: #{tpu_custom_call.1} parent=5 // pred_check
        %p1551 = pneg %p1550
      $region38: #{tpu_custom_call.1} parent=5 // pred_check_branch
        %1553 = sbr.rel (%p1551) target = $region40
      $region39: #{tpu_custom_call.1} parent=5 // pred_region
        %s1554 = ssub.s32 %s12, 2
        // Predicated region
        $region41: #{tpu_custom_call.1} parent=39 // pred_check
          %p1555 = pneg %p109
        $region42: #{tpu_custom_call.1} parent=39 // pred_check_branch
          %1557 = sbr.rel (%p1555) target = $region44
        $region43: #{tpu_custom_call.1} parent=39 // pred_region
          %s1558 = sand.u32 %s94, 1
          %s1559 = scalar_lea.sflag [#allocation3], %s1558
          %s1560 = sand.u32 %s94, 1
          %s1561 = smul.addr %s1560, 512
          %s1562 = scalar_lea.vmem [#allocation2], %s1561
          %1563 = dma.done %s1559, 8192
        $region44: #{tpu_custom_call.1} parent=39 // pred_fallthru
          _
      $region40: #{tpu_custom_call.1} parent=5 // pred_fallthru
        _
    $region6: #{tpu_custom_call.1} parent=1 // loop_footer
      %s16 = sadd.s32 1, %s12
    $region7: #{tpu_custom_call.1} parent=1 // loop_footer_branch
      %11 = sbr.rel target = $region3
    $region8: #{tpu_custom_call.1} parent=1 // loop_exit
      _
    %1564 = vsyncpa [#allocation3], 1
    %s1565 = scalar_lea.sflag [#allocation3], 1
    %1566 = vsyncpa %s1565, 1

</llo_original>
